<compile_context>
chip_gen: v5e
topology: v5e:2x2
jax: 0.10.0
libtpu: 0.0.40
codegen_flags: <defaults>
</compile_context>

<pallas_src>
import functools
import math

import jax
import jax.numpy as jnp
from jax import lax
from jax.experimental import pallas as pl
from jax.experimental.pallas import tpu as pltpu


# ----------------------------------------------------------------------------
# Pallas kernel: fused conv1(dilated, causal) -> gelu -> conv2(1x1) -> residual
# ----------------------------------------------------------------------------
def _tcn_cell_kernel(h_ref, outprev_ref, w1_ref, b1_ref, w2_ref, b2_ref,
                     o1_ref, o2_ref, xpad_scr,
                     *, K, dilation, padding, L, Cin, Bt):
    # In-kernel causal ('backward') left pad: keep the first `padding` columns
    # zero and copy the current batch tile behind them.  Avoids materializing
    # a padded copy of h_prev in HBM and a second input DMA stream.
    if padding > 0:
        xpad_scr[:, :, :padding] = jnp.zeros((Bt, Cin, padding), jnp.float32)
    xpad_scr[:, :, padding:] = h_ref[...]

    # Stacked dilated windows, sliced straight from the scratch ref:
    #   win[k*Cin + c, b*L + t] = xpad[b, c, k*dilation + t]
    cols = []
    for b in range(Bt):
        taps = [xpad_scr[b, :, k * dilation:k * dilation + L] for k in range(K)]
        cols.append(jnp.concatenate(taps, axis=0) if K > 1 else taps[0])
    win = cols[0] if Bt == 1 else jnp.concatenate(cols, axis=-1)  # [K*Cin, Bt*L]

    # conv1: all K taps fused into ONE MXU matmul (contraction = K*Cin),
    # bias folded into the result (no zeros accumulator).
    h = jnp.dot(w1_ref[...], win, preferred_element_type=jnp.float32) + b1_ref[...]

    # exact (erf) GELU — matches torch.nn.functional.gelu default.
    # TODO(synk): tanh-approx GELU would route this to the EUP if VALU-bound,
    # but it changes numerics vs. torch's exact default.
    h = 0.5 * h * (1.0 + lax.erf(h * (1.0 / math.sqrt(2.0))))

    # conv2 (1x1): single matmul over the lane-merged slab  [2*Cin, Cout] @ [Cout, Bt*L]
    y = jnp.dot(w2_ref[...], h, preferred_element_type=jnp.float32) + b2_ref[...]

    # chunk along channel dim + residual adds, stored per folded batch.
    for b in range(Bt):
        yb = y[:, b * L:(b + 1) * L]
        o1_ref[b] = (h_ref[b] + yb[:Cin, :]).astype(o1_ref.dtype)
        o2_ref[b] = (outprev_ref[b] + yb[Cin:, :]).astype(o2_ref.dtype)


def _pick_batch_tile(B, L, Cin, bytes_cap=2 << 20):
    """Fold batches per grid step until the compute slab is >=128 lanes wide
    (amortizes per-step overhead / masked-store waste for small L), while
    keeping the per-block footprint modest so double-buffering also fits
    v7x's smaller (64 MiB) VMEM."""
    bt = 1
    for d in range(1, B + 1):
        if B % d != 0:
            continue
        if d > 1 and d * Cin * L * 4 > bytes_cap:
            break
        bt = d
        if d * L >= 128:
            break
    return bt


def tcn_cell_forward(h_prev, out_prev, w1_flat, b1, w2, b2,
                     *, K, dilation, padding):
    """h_prev/out_prev: [B, Cin, L] float32.
    w1_flat: [Cout, K*Cin] (grouped conv expanded block-diagonally, taps stacked
    to match the kernel's window layout), b1: [Cout, 1],
    w2: [2*Cin, Cout], b2: [2*Cin, 1]."""
    B, Cin, L = h_prev.shape
    Cout = w1_flat.shape[0]
    Lpad = L + padding

    Bt = _pick_batch_tile(B, L, Cin)
    assert B % Bt == 0

    kernel = functools.partial(_tcn_cell_kernel, K=K, dilation=dilation,
                               padding=padding, L=L, Cin=Cin, Bt=Bt)

    grid_spec = pltpu.PrefetchScalarGridSpec(
        num_scalar_prefetch=0,
        grid=(B // Bt,),
        in_specs=[
            pl.BlockSpec((Bt, Cin, L),    lambda i: (i, 0, 0)),  # h_prev
            pl.BlockSpec((Bt, Cin, L),    lambda i: (i, 0, 0)),  # out_prev
            pl.BlockSpec((Cout, K * Cin), lambda i: (0, 0)),     # w1 (resident)
            pl.BlockSpec((Cout, 1),       lambda i: (0, 0)),     # b1
            pl.BlockSpec((2 * Cin, Cout), lambda i: (0, 0)),     # w2
            pl.BlockSpec((2 * Cin, 1),    lambda i: (0, 0)),     # b2
        ],
        out_specs=[
            pl.BlockSpec((Bt, Cin, L), lambda i: (i, 0, 0)),
            pl.BlockSpec((Bt, Cin, L), lambda i: (i, 0, 0)),
        ],
        scratch_shapes=[pltpu.VMEM((Bt, Cin, Lpad), jnp.float32)],
    )

    return pl.pallas_call(
        kernel,
        out_shape=(jax.ShapeDtypeStruct((B, Cin, L), jnp.float32),
                   jax.ShapeDtypeStruct((B, Cin, L), jnp.float32)),
        grid_spec=grid_spec,
        compiler_params=pltpu.CompilerParams(
            dimension_semantics=("parallel",),
            vmem_limit_bytes=32 * 1024 * 1024),
    )(h_prev, out_prev, w1_flat, b1, w2, b2)


# ----------------------------------------------------------------------------
# Parameter construction (deterministic, mirrors CustomConv1d + weight_norm init)
# ----------------------------------------------------------------------------
def make_params(key, in_channels, out_channels, kernel_size, groups):
    k1, k2, k3, k4 = jax.random.split(key, 4)

    # conv1: CustomConv1d(in_channels, out_channels, kernel_size, groups=groups)
    kk = math.sqrt(1.0 / (in_channels * kernel_size))
    w1_v = jax.random.uniform(k1, (out_channels, in_channels // groups, kernel_size),
                              minval=-kk, maxval=kk, dtype=jnp.float32)
    b1 = jax.random.uniform(k2, (out_channels,), minval=-kk, maxval=kk,
                            dtype=jnp.float32)
    # weight_norm (dim=0): g initialized to ||v|| -> w == v at init; keep the
    # reparameterization explicit for semantic fidelity.
    n1 = jnp.sqrt(jnp.sum(w1_v ** 2, axis=(1, 2), keepdims=True))
    w1 = n1 * w1_v / n1                                   # [Cout, Cin//G, K]

    # conv2: CustomConv1d(out_channels, in_channels*2, 1)
    kk2 = math.sqrt(1.0 / (out_channels * 1))
    w2_v = jax.random.uniform(k3, (in_channels * 2, out_channels, 1),
                              minval=-kk2, maxval=kk2, dtype=jnp.float32)
    b2 = jax.random.uniform(k4, (in_channels * 2,), minval=-kk2, maxval=kk2,
                            dtype=jnp.float32)
    n2 = jnp.sqrt(jnp.sum(w2_v ** 2, axis=(1, 2), keepdims=True))
    w2 = n2 * w2_v / n2                                   # [2*Cin, Cout, 1]

    return w1, b1, w2, b2


def grouped_weight_to_stacked(w1, in_channels, groups):
    """[Cout, Cin//G, K] grouped weight -> dense [Cout, K*Cin] matching the
    kernel's stacked-window contraction layout (row index = k*Cin + c)."""
    Cout, cin_pg, K = w1.shape
    cout_pg = Cout // groups
    w_dense = jnp.zeros((Cout, in_channels, K), jnp.float32)
    for g in range(groups):
        w_dense = w_dense.at[g * cout_pg:(g + 1) * cout_pg,
                             g * cin_pg:(g + 1) * cin_pg, :].set(
            w1[g * cout_pg:(g + 1) * cout_pg])
    # [Cout, Cin, K] -> [Cout, K, Cin] -> [Cout, K*Cin]
    # TODO(synk): per-group matmuls would avoid the structural zeros when groups is large.
    return jnp.transpose(w_dense, (0, 2, 1)).reshape(Cout, K * in_channels)


# ----------------------------------------------------------------------------
# Pure-JAX reference (for correctness check)
# ----------------------------------------------------------------------------
def ref_forward(h_prev, out_prev, w1, b1, w2, b2, *, dilation, padding, groups):
    Cin = h_prev.shape[1]
    xpad = jnp.pad(h_prev, ((0, 0), (0, 0), (padding, 0)))
    h = lax.conv_general_dilated(
        xpad, w1, window_strides=(1,), padding='VALID',
        rhs_dilation=(dilation,), dimension_numbers=('NCH', 'OIH', 'NCH'),
        feature_group_count=groups) + b1[None, :, None]
    h = jax.nn.gelu(h, approximate=False)
    y = lax.conv_general_dilated(
        h, w2, window_strides=(1,), padding='VALID',
        dimension_numbers=('NCH', 'OIH', 'NCH')) + b2[None, :, None]
    return h_prev + y[:, :Cin], out_prev + y[:, Cin:]


if __name__ == "__main__":
    # module config
    B, Cin, Cout, K, dilation, groups, L = 2, 4, 8, 3, 2, 2, 16
    padding = dilation * (K - 1)   # causal padding so output length == L

    key = jax.random.PRNGKey(0)
    kh, ko, kp = jax.random.split(key, 3)

    h_prev = jax.random.normal(kh, (B, Cin, L), dtype=jnp.float32)
    out_prev = jax.random.normal(ko, (B, Cin, L), dtype=jnp.float32)

    w1, b1, w2, b2 = make_params(kp, Cin, Cout, K, groups)

    # glue: grouped weight -> dense stacked-tap matrix, squeeze the 1x1 conv2
    w1_flat = grouped_weight_to_stacked(w1, Cin, groups)     # [Cout, K*Cin]
    b1_col = b1.reshape(Cout, 1)
    w2_mat = w2[:, :, 0]                                      # [2*Cin, Cout]
    b2_col = b2.reshape(2 * Cin, 1)

    o1, o2 = tcn_cell_forward(h_prev, out_prev, w1_flat, b1_col, w2_mat, b2_col,
                              K=K, dilation=dilation, padding=padding)
    jax.block_until_ready((o1, o2))

    r1, r2 = ref_forward(h_prev, out_prev, w1, b1, w2, b2,
                         dilation=dilation, padding=padding, groups=groups)
    assert jnp.allclose(o1, r1, rtol=1e-5, atol=1e-5), "h_next mismatch"
    assert jnp.allclose(o2, r2, rtol=1e-5, atol=1e-5), "out_next mismatch"

    print("KERNEL_OK")
</pallas_src>

<mosaic_0001>
module attributes {stable_mosaic.version = 11 : i64} {
  func.func @_tcn_cell_kernel(%arg0: i32, %arg1: memref<2x4x16xf32, #tpu.memory_space<vmem>>, %arg2: memref<2x4x16xf32, #tpu.memory_space<vmem>>, %arg3: memref<8x12xf32, #tpu.memory_space<vmem>>, %arg4: memref<8x1xf32, #tpu.memory_space<vmem>>, %arg5: memref<8x8xf32, #tpu.memory_space<vmem>>, %arg6: memref<8x1xf32, #tpu.memory_space<vmem>>, %arg7: memref<2x4x16xf32, #tpu.memory_space<vmem>>, %arg8: memref<2x4x16xf32, #tpu.memory_space<vmem>>, %arg9: memref<2x4x20xf32, #tpu.memory_space<vmem>>) attributes {dimension_semantics = [#tpu.dimension_semantics<parallel>], iteration_bounds = array<i64: 1>, scalar_prefetch = 0 : i64, scratch_operands = 1 : i64, tpu.core_type = #tpu.core_type<tc>, window_params = [{transform_indices = @transform_0, window_bounds = array<i64: 2, 4, 16>}, {transform_indices = @transform_1, window_bounds = array<i64: 2, 4, 16>}, {pipeline_mode = #tpu.pipeline_mode<synchronous>, transform_indices = @transform_2, window_bounds = array<i64: 8, 12>}, {pipeline_mode = #tpu.pipeline_mode<synchronous>, transform_indices = @transform_3, window_bounds = array<i64: 8, 1>}, {pipeline_mode = #tpu.pipeline_mode<synchronous>, transform_indices = @transform_4, window_bounds = array<i64: 8, 8>}, {pipeline_mode = #tpu.pipeline_mode<synchronous>, transform_indices = @transform_5, window_bounds = array<i64: 8, 1>}, {transform_indices = @transform_6, window_bounds = array<i64: 2, 4, 16>}, {transform_indices = @transform_7, window_bounds = array<i64: 2, 4, 16>}]} {
    %cst = arith.constant 0.000000e+00 : f32
    %0 = vector.broadcast %cst : f32 to vector<2x4x4xf32>
    %c0 = arith.constant 0 : index
    %c0_0 = arith.constant 0 : index
    %c0_1 = arith.constant 0 : index
    %1 = vector.load %arg9[%c0, %c0_0, %c0_1] : memref<2x4x20xf32, #tpu.memory_space<vmem>>, vector<2x4x4xf32>
    tpu.vector_store %arg9[%c0, %c0_0, %c0_1], %0 {strides = array<i32>} : memref<2x4x20xf32, #tpu.memory_space<vmem>>, vector<2x4x4xf32>,
    %c0_2 = arith.constant 0 : index
    %c0_3 = arith.constant 0 : index
    %c0_4 = arith.constant 0 : index
    %2 = vector.load %arg1[%c0_2, %c0_3, %c0_4] : memref<2x4x16xf32, #tpu.memory_space<vmem>>, vector<2x4x16xf32>
    %c0_5 = arith.constant 0 : index
    %c0_6 = arith.constant 0 : index
    %c4 = arith.constant 4 : index
    %3 = vector.load %arg9[%c0_5, %c0_6, %c4] : memref<2x4x20xf32, #tpu.memory_space<vmem>>, vector<2x4x16xf32>
    tpu.vector_store %arg9[%c0_5, %c0_6, %c4], %2 {strides = array<i32>} : memref<2x4x20xf32, #tpu.memory_space<vmem>>, vector<2x4x16xf32>,
    %c0_7 = arith.constant 0 : index
    %c0_8 = arith.constant 0 : index
    %c0_9 = arith.constant 0 : index
    %4 = vector.load %arg9[%c0_7, %c0_8, %c0_9] : memref<2x4x20xf32, #tpu.memory_space<vmem>>, vector<1x4x16xf32>
    %5 = vector.shape_cast %4 : vector<1x4x16xf32> to vector<4x16xf32>
    %c0_10 = arith.constant 0 : index
    %c0_11 = arith.constant 0 : index
    %c2 = arith.constant 2 : index
    %6 = vector.load %arg9[%c0_10, %c0_11, %c2] : memref<2x4x20xf32, #tpu.memory_space<vmem>>, vector<1x4x16xf32>
    %7 = vector.shape_cast %6 : vector<1x4x16xf32> to vector<4x16xf32>
    %c0_12 = arith.constant 0 : index
    %c0_13 = arith.constant 0 : index
    %c4_14 = arith.constant 4 : index
    %8 = vector.load %arg9[%c0_12, %c0_13, %c4_14] : memref<2x4x20xf32, #tpu.memory_space<vmem>>, vector<1x4x16xf32>
    %9 = vector.shape_cast %8 : vector<1x4x16xf32> to vector<4x16xf32>
    %10 = tpu.concatenate %5, %7, %9 in 0 : vector<4x16xf32>, vector<4x16xf32>, vector<4x16xf32> -> vector<12x16xf32>
    %c1 = arith.constant 1 : index
    %c0_15 = arith.constant 0 : index
    %c0_16 = arith.constant 0 : index
    %11 = vector.load %arg9[%c1, %c0_15, %c0_16] : memref<2x4x20xf32, #tpu.memory_space<vmem>>, vector<1x4x16xf32>
    %12 = vector.shape_cast %11 : vector<1x4x16xf32> to vector<4x16xf32>
    %c1_17 = arith.constant 1 : index
    %c0_18 = arith.constant 0 : index
    %c2_19 = arith.constant 2 : index
    %13 = vector.load %arg9[%c1_17, %c0_18, %c2_19] : memref<2x4x20xf32, #tpu.memory_space<vmem>>, vector<1x4x16xf32>
    %14 = vector.shape_cast %13 : vector<1x4x16xf32> to vector<4x16xf32>
    %c1_20 = arith.constant 1 : index
    %c0_21 = arith.constant 0 : index
    %c4_22 = arith.constant 4 : index
    %15 = vector.load %arg9[%c1_20, %c0_21, %c4_22] : memref<2x4x20xf32, #tpu.memory_space<vmem>>, vector<1x4x16xf32>
    %16 = vector.shape_cast %15 : vector<1x4x16xf32> to vector<4x16xf32>
    %17 = tpu.concatenate %12, %14, %16 in 0 : vector<4x16xf32>, vector<4x16xf32>, vector<4x16xf32> -> vector<12x16xf32>
    %18 = tpu.concatenate %10, %17 in 1 : vector<12x16xf32>, vector<12x16xf32> -> vector<12x32xf32>
    %c0_23 = arith.constant 0 : index
    %c0_24 = arith.constant 0 : index
    %19 = vector.load %arg3[%c0_23, %c0_24] : memref<8x12xf32, #tpu.memory_space<vmem>>, vector<8x12xf32>
    %cst_25 = arith.constant dense<0.000000e+00> : vector<8x32xf32>
    %20 = tpu.matmul %19, %18, %cst_25 {dimension_numbers = #tpu.dot_dimension_numbers<[1], [0], [0], [1], [0, 0, 1, 1], [], []>} : vector<8x12xf32>, vector<12x32xf32>, vector<8x32xf32> -> vector<8x32xf32>
    %c0_26 = arith.constant 0 : index
    %c0_27 = arith.constant 0 : index
    %21 = vector.load %arg4[%c0_26, %c0_27] : memref<8x1xf32, #tpu.memory_space<vmem>>, vector<8x1xf32>
    %22 = vector.broadcast %21 : vector<8x1xf32> to vector<8x32xf32>
    %23 = arith.addf %20, %22 : vector<8x32xf32>
    %cst_28 = arith.constant 5.000000e-01 : f32
    %24 = vector.broadcast %cst_28 : f32 to vector<8x32xf32>
    %25 = arith.mulf %24, %23 : vector<8x32xf32>
    %cst_29 = arith.constant 0.707106769 : f32
    %26 = vector.broadcast %cst_29 : f32 to vector<8x32xf32>
    %27 = arith.mulf %23, %26 : vector<8x32xf32>
    %28 = math.erf %27 : vector<8x32xf32>
    %cst_30 = arith.constant 1.000000e+00 : f32
    %29 = vector.broadcast %cst_30 : f32 to vector<8x32xf32>
    %30 = arith.addf %29, %28 : vector<8x32xf32>
    %31 = arith.mulf %25, %30 : vector<8x32xf32>
    %c0_31 = arith.constant 0 : index
    %c0_32 = arith.constant 0 : index
    %32 = vector.load %arg5[%c0_31, %c0_32] : memref<8x8xf32, #tpu.memory_space<vmem>>, vector<8x8xf32>
    %cst_33 = arith.constant dense<0.000000e+00> : vector<8x32xf32>
    %33 = tpu.matmul %32, %31, %cst_33 {dimension_numbers = #tpu.dot_dimension_numbers<[1], [0], [0], [1], [0, 0, 1, 1], [], []>} : vector<8x8xf32>, vector<8x32xf32>, vector<8x32xf32> -> vector<8x32xf32>
    %c0_34 = arith.constant 0 : index
    %c0_35 = arith.constant 0 : index
    %34 = vector.load %arg6[%c0_34, %c0_35] : memref<8x1xf32, #tpu.memory_space<vmem>>, vector<8x1xf32>
    %35 = vector.broadcast %34 : vector<8x1xf32> to vector<8x32xf32>
    %36 = arith.addf %33, %35 : vector<8x32xf32>
    %37 = vector.extract_strided_slice %36 {offsets = [0, 0], sizes = [8, 16], strides = [1, 1]} : vector<8x32xf32> to vector<8x16xf32>
    %c0_36 = arith.constant 0 : index
    %c0_37 = arith.constant 0 : index
    %c0_38 = arith.constant 0 : index
    %38 = vector.load %arg1[%c0_36, %c0_37, %c0_38] : memref<2x4x16xf32, #tpu.memory_space<vmem>>, vector<1x4x16xf32>
    %39 = vector.shape_cast %38 : vector<1x4x16xf32> to vector<4x16xf32>
    %40 = vector.extract_strided_slice %37 {offsets = [0, 0], sizes = [4, 16], strides = [1, 1]} : vector<8x16xf32> to vector<4x16xf32>
    %41 = arith.addf %39, %40 : vector<4x16xf32>
    %c0_39 = arith.constant 0 : index
    %c0_40 = arith.constant 0 : index
    %c0_41 = arith.constant 0 : index
    %42 = vector.load %arg7[%c0_39, %c0_40, %c0_41] : memref<2x4x16xf32, #tpu.memory_space<vmem>>, vector<1x4x16xf32>
    %43 = vector.shape_cast %42 : vector<1x4x16xf32> to vector<4x16xf32>
    %44 = vector.shape_cast %41 : vector<4x16xf32> to vector<1x4x16xf32>
    tpu.vector_store %arg7[%c0_39, %c0_40, %c0_41], %44 {strides = array<i32>} : memref<2x4x16xf32, #tpu.memory_space<vmem>>, vector<1x4x16xf32>,
    %c0_42 = arith.constant 0 : index
    %c0_43 = arith.constant 0 : index
    %c0_44 = arith.constant 0 : index
    %45 = vector.load %arg2[%c0_42, %c0_43, %c0_44] : memref<2x4x16xf32, #tpu.memory_space<vmem>>, vector<1x4x16xf32>
    %46 = vector.shape_cast %45 : vector<1x4x16xf32> to vector<4x16xf32>
    %47 = vector.extract_strided_slice %37 {offsets = [4, 0], sizes = [4, 16], strides = [1, 1]} : vector<8x16xf32> to vector<4x16xf32>
    %48 = arith.addf %46, %47 : vector<4x16xf32>
    %c0_45 = arith.constant 0 : index
    %c0_46 = arith.constant 0 : index
    %c0_47 = arith.constant 0 : index
    %49 = vector.load %arg8[%c0_45, %c0_46, %c0_47] : memref<2x4x16xf32, #tpu.memory_space<vmem>>, vector<1x4x16xf32>
    %50 = vector.shape_cast %49 : vector<1x4x16xf32> to vector<4x16xf32>
    %51 = vector.shape_cast %48 : vector<4x16xf32> to vector<1x4x16xf32>
    tpu.vector_store %arg8[%c0_45, %c0_46, %c0_47], %51 {strides = array<i32>} : memref<2x4x16xf32, #tpu.memory_space<vmem>>, vector<1x4x16xf32>,
    %52 = vector.extract_strided_slice %36 {offsets = [0, 16], sizes = [8, 16], strides = [1, 1]} : vector<8x32xf32> to vector<8x16xf32>
    %c1_48 = arith.constant 1 : index
    %c0_49 = arith.constant 0 : index
    %c0_50 = arith.constant 0 : index
    %53 = vector.load %arg1[%c1_48, %c0_49, %c0_50] : memref<2x4x16xf32, #tpu.memory_space<vmem>>, vector<1x4x16xf32>
    %54 = vector.shape_cast %53 : vector<1x4x16xf32> to vector<4x16xf32>
    %55 = vector.extract_strided_slice %52 {offsets = [0, 0], sizes = [4, 16], strides = [1, 1]} : vector<8x16xf32> to vector<4x16xf32>
    %56 = arith.addf %54, %55 : vector<4x16xf32>
    %c1_51 = arith.constant 1 : index
    %c0_52 = arith.constant 0 : index
    %c0_53 = arith.constant 0 : index
    %57 = vector.load %arg7[%c1_51, %c0_52, %c0_53] : memref<2x4x16xf32, #tpu.memory_space<vmem>>, vector<1x4x16xf32>
    %58 = vector.shape_cast %57 : vector<1x4x16xf32> to vector<4x16xf32>
    %59 = vector.shape_cast %56 : vector<4x16xf32> to vector<1x4x16xf32>
    tpu.vector_store %arg7[%c1_51, %c0_52, %c0_53], %59 {strides = array<i32>} : memref<2x4x16xf32, #tpu.memory_space<vmem>>, vector<1x4x16xf32>,
    %c1_54 = arith.constant 1 : index
    %c0_55 = arith.constant 0 : index
    %c0_56 = arith.constant 0 : index
    %60 = vector.load %arg2[%c1_54, %c0_55, %c0_56] : memref<2x4x16xf32, #tpu.memory_space<vmem>>, vector<1x4x16xf32>
    %61 = vector.shape_cast %60 : vector<1x4x16xf32> to vector<4x16xf32>
    %62 = vector.extract_strided_slice %52 {offsets = [4, 0], sizes = [4, 16], strides = [1, 1]} : vector<8x16xf32> to vector<4x16xf32>
    %63 = arith.addf %61, %62 : vector<4x16xf32>
    %c1_57 = arith.constant 1 : index
    %c0_58 = arith.constant 0 : index
    %c0_59 = arith.constant 0 : index
    %64 = vector.load %arg8[%c1_57, %c0_58, %c0_59] : memref<2x4x16xf32, #tpu.memory_space<vmem>>, vector<1x4x16xf32>
    %65 = vector.shape_cast %64 : vector<1x4x16xf32> to vector<4x16xf32>
    %66 = vector.shape_cast %63 : vector<4x16xf32> to vector<1x4x16xf32>
    tpu.vector_store %arg8[%c1_57, %c0_58, %c0_59], %66 {strides = array<i32>} : memref<2x4x16xf32, #tpu.memory_space<vmem>>, vector<1x4x16xf32>,
    return
  }
  func.func @transform_0(%arg0: i32) -> (i32, i32, i32) {
    %c0_i32 = arith.constant 0 : i32
    %c0_i32_0 = arith.constant 0 : i32
    %c0_i32_1 = arith.constant 0 : i32
    return %arg0, %c0_i32, %c0_i32_0 : i32, i32, i32
  }
  func.func @transform_1(%arg0: i32) -> (i32, i32, i32) {
    %c0_i32 = arith.constant 0 : i32
    %c0_i32_0 = arith.constant 0 : i32
    %c0_i32_1 = arith.constant 0 : i32
    return %arg0, %c0_i32, %c0_i32_0 : i32, i32, i32
  }
  func.func @transform_2(%arg0: i32) -> (i32, i32) {
    %c0_i32 = arith.constant 0 : i32
    %c0_i32_0 = arith.constant 0 : i32
    %c0_i32_1 = arith.constant 0 : i32
    return %c0_i32, %c0_i32_0 : i32, i32
  }
  func.func @transform_3(%arg0: i32) -> (i32, i32) {
    %c0_i32 = arith.constant 0 : i32
    %c0_i32_0 = arith.constant 0 : i32
    %c0_i32_1 = arith.constant 0 : i32
    return %c0_i32, %c0_i32_0 : i32, i32
  }
  func.func @transform_4(%arg0: i32) -> (i32, i32) {
    %c0_i32 = arith.constant 0 : i32
    %c0_i32_0 = arith.constant 0 : i32
    %c0_i32_1 = arith.constant 0 : i32
    return %c0_i32, %c0_i32_0 : i32, i32
  }
  func.func @transform_5(%arg0: i32) -> (i32, i32) {
    %c0_i32 = arith.constant 0 : i32
    %c0_i32_0 = arith.constant 0 : i32
    %c0_i32_1 = arith.constant 0 : i32
    return %c0_i32, %c0_i32_0 : i32, i32
  }
  func.func @transform_6(%arg0: i32) -> (i32, i32, i32) {
    %c0_i32 = arith.constant 0 : i32
    %c0_i32_0 = arith.constant 0 : i32
    %c0_i32_1 = arith.constant 0 : i32
    return %arg0, %c0_i32, %c0_i32_0 : i32, i32, i32
  }
  func.func @transform_7(%arg0: i32) -> (i32, i32, i32) {
    %c0_i32 = arith.constant 0 : i32
    %c0_i32_0 = arith.constant 0 : i32
    %c0_i32_1 = arith.constant 0 : i32
    return %arg0, %c0_i32, %c0_i32_0 : i32, i32, i32
  }
}

</mosaic_0001>

<llo_original>
// kernel: tpu_custom_call.1
$region0: #{tpu_custom_call.1}
  #allocation0 [shape = 'u32[]', space=smem, size = 0x4, offset = 0x4, fixed_abs, tag = 'smem constant byte address 0x4 - core index']
  #allocation1 [shape = 'u32[72,128]{1,0:T(1,128)}', space=vmem, size = 0x9000, scoped, tag = 'internal scratch']
  #allocation2 [shape = 'f32[2,4,20]{2,1,0:T(4,128)}', space=vmem, size = 0x1000, scoped, tag = 'scratch operand']
  %s0 = inlined_call_operand.vmem [shape: f32[2,4,16], index: 0, kind: input, shape index: {}]
  %s1 = inlined_call_operand.vmem [shape: f32[2,4,16], index: 1, kind: input, shape index: {}]
  %s2 = inlined_call_operand.hbm [shape: f32[8,12], index: 2, kind: input, shape index: {}]
  %s3 = inlined_call_operand.vmem [shape: f32[8,1], index: 3, kind: input, shape index: {}]
  %s4 = inlined_call_operand.hbm [shape: f32[8,8], index: 4, kind: input, shape index: {}]
  %s5 = inlined_call_operand.vmem [shape: f32[8,1], index: 5, kind: input, shape index: {}]
  %s6 = inlined_call_operand.hbm [shape: f32[2,4,16], index: 6, kind: output, shape index: {0}]
  %s7 = inlined_call_operand.hbm [shape: f32[2,4,16], index: 7, kind: output, shape index: {1}]
  %8 = xla_tuple %s6, %s7
  %s9 = sld [smem:[#allocation0]]
  $region50: #{tpu_custom_call.1} parent=0
    _
  %s11 = ssub.s32 1, %s9
  %s12 = scalar_select 0, %s11, %s9
  $region1: #{tpu_custom_call.1} parent=0
    #allocation3 [shape = 'u8[4096]{0}', space=vmem, size = 0x1000, scoped, tag = 'input window, operand 2, single buffered']
    #allocation4 [shape = 's32[1]{0}', space=sflag, size = 0x4, scoped, tag = 'scoped memory for tpu_custom_call.1']
    #allocation5 [shape = 's32[1]{0}', space=sflag, size = 0x4, scoped, tag = 'scoped memory for tpu_custom_call.1']
    #allocation6 [shape = 'u8[4096]{0}', space=vmem, size = 0x1000, scoped, tag = 'input window, operand 4, single buffered']
    #allocation7 [shape = 's32[1]{0}', space=sflag, size = 0x4, scoped, tag = 'scoped memory for tpu_custom_call.1']
    #allocation8 [shape = 'u8[4096]{0}', space=vmem, size = 0x1000, scoped, tag = 'output window, operand 0, single buffered']
    #allocation9 [shape = 'u8[4096]{0}', space=vmem, size = 0x1000, scoped, tag = 'output window, operand 1, single buffered']
    #allocation10 [shape = 's32[1]{0}', space=sflag, size = 0x4, scoped, tag = 'scoped memory for tpu_custom_call.1']
    %13 = vsyncpa [#allocation4], 0
    %14 = vsyncpa [#allocation7], 0
    %15 = vsyncpa [#allocation5], 0
    %16 = vsyncpa [#allocation10], 0
    // Predicated region
    $region2: #{tpu_custom_call.1} parent=1 // pred_check
      _
    $region3: #{tpu_custom_call.1} parent=1 // pred_check_branch
      %18 = sbr.rel (0) target = $region5
    $region4: #{tpu_custom_call.1} parent=1 // pred_region
      _
    $region5: #{tpu_custom_call.1} parent=1 // pred_fallthru
      _
    // Predicated region
    $region6: #{tpu_custom_call.1} parent=1 // pred_check
      _
    $region7: #{tpu_custom_call.1} parent=1 // pred_check_branch
      %20 = sbr.rel (0) target = $region9
    $region8: #{tpu_custom_call.1} parent=1 // pred_region
      _
    $region9: #{tpu_custom_call.1} parent=1 // pred_fallthru
      _
    // Predicated region
    $region10: #{tpu_custom_call.1} parent=1 // pred_check
      _
    $region11: #{tpu_custom_call.1} parent=1 // pred_check_branch
      %22 = sbr.rel (0) target = $region13
    $region12: #{tpu_custom_call.1} parent=1 // pred_region
      %24 = vsyncadd [#allocation4], 0
      %s26 = sshll.u32 %s2, 4
      %s27 = int_to_ptr.hbm [resolvable:$true] %s26
      %s28 = sshll.u32 [#allocation3], 4
      %s29 = int_to_ptr.vmem [resolvable:$true] %s28
      %31 = dma.hbm_to_vmem [thread:$0]  %s27, 128, %s29, [#allocation4]
    $region13: #{tpu_custom_call.1} parent=1 // pred_fallthru
      _
    // Predicated region
    $region14: #{tpu_custom_call.1} parent=1 // pred_check
      _
    $region15: #{tpu_custom_call.1} parent=1 // pred_check_branch
      %33 = sbr.rel (0) target = $region17
    $region16: #{tpu_custom_call.1} parent=1 // pred_region
      _
    $region17: #{tpu_custom_call.1} parent=1 // pred_fallthru
      _
    // Predicated region
    $region18: #{tpu_custom_call.1} parent=1 // pred_check
      _
    $region19: #{tpu_custom_call.1} parent=1 // pred_check_branch
      %35 = sbr.rel (0) target = $region21
    $region20: #{tpu_custom_call.1} parent=1 // pred_region
      %37 = vsyncadd [#allocation7], 0
      %s39 = sshll.u32 %s4, 4
      %s40 = int_to_ptr.hbm [resolvable:$true] %s39
      %s41 = sshll.u32 [#allocation6], 4
      %s42 = int_to_ptr.vmem [resolvable:$true] %s41
      %44 = dma.hbm_to_vmem [thread:$0]  %s40, 128, %s42, [#allocation7]
    $region21: #{tpu_custom_call.1} parent=1 // pred_fallthru
      _
    // Predicated region
    $region22: #{tpu_custom_call.1} parent=1 // pred_check
      _
    $region23: #{tpu_custom_call.1} parent=1 // pred_check_branch
      %46 = sbr.rel (0) target = $region25
    $region24: #{tpu_custom_call.1} parent=1 // pred_region
      _
    $region25: #{tpu_custom_call.1} parent=1 // pred_fallthru
      _
    // Predicated region
    $region26: #{tpu_custom_call.1} parent=1 // pred_check
      _
    $region27: #{tpu_custom_call.1} parent=1 // pred_check_branch
      %48 = sbr.rel (0) target = $region29
    $region28: #{tpu_custom_call.1} parent=1 // pred_region
      %50 = dma.done [#allocation4], 128
    $region29: #{tpu_custom_call.1} parent=1 // pred_fallthru
      _
    // Predicated region
    $region30: #{tpu_custom_call.1} parent=1 // pred_check
      _
    $region31: #{tpu_custom_call.1} parent=1 // pred_check_branch
      %52 = sbr.rel (0) target = $region33
    $region32: #{tpu_custom_call.1} parent=1 // pred_region
      %54 = dma.done [#allocation7], 128
    $region33: #{tpu_custom_call.1} parent=1 // pred_fallthru
      _
    %vm55 = vcmask 27648
    %56 = vst.msk [vmem:[#allocation2] sm:$0xf] %vm55, 0.0
    %57 = vst.msk [vmem:[#allocation2 + $0x4] sm:$0xf] %vm55, 0.0
    %v58 = vld [vmem:[%s0] sm:$0xf]
    %v59 = vld [vmem:[%s0 + $0x4] sm:$0xf]
    %62 = vrot.lane.b32.xlu0 %v58, 4
    %v63 = vpop.permute.xlu0 %62
    %64 = vrot.lane.b32.xlu0 %v59, 4
    %v65 = vpop.permute.xlu0 %64
    %vm68 = vcmask 158752
    %69 = vst.msk [vmem:[#allocation2] sm:$0xf] %vm68, %v63
    %70 = vst.msk [vmem:[#allocation2 + $0x4] sm:$0xf] %vm68, %v65
    %v71 = vld [vmem:[#allocation2] sm:$0xf]
    %v73 = vrot.slane %v71, 4
    %74 = vrot.lane.b32.xlu0 %v73, 126
    %v75 = vpop.permute.xlu0 %74
    %77 = vrot.lane.b32.xlu0 %v71, 124
    %v78 = vpop.permute.xlu0 %77
    %vm80 = vcmask 1043456
    %v81 = vsel %vm80, %v71, %v75
    %s82 = scalar_lea.vmem [#allocation2], 4
    %v83 = vld [vmem:[%s82] sm:$0xf]
    %v85 = vrot.slane %v83, 4
    %86 = vrot.lane.b32.xlu0 %v85, 126
    %v87 = vpop.permute.xlu0 %86
    %89 = vrot.lane.b32.xlu0 %v83, 124
    %v90 = vpop.permute.xlu0 %89
    %v91 = vsel %vm80, %v83, %v87
    %93 = vrot.lane.b32.xlu0 %v91, 16
    %v94 = vpop.permute.xlu0 %93
    %95 = vrot.lane.b32.xlu0 %v90, 16
    %v96 = vpop.permute.xlu0 %95
    %vm99 = vcmask 130048
    %v100 = vsel %vm99, %v81, %v94
    %v101 = vsel %vm99, %v78, %v96
    %v102 = vld [vmem:[#allocation3] sm:$0xff]
    %v103 = vld [vmem:[%s3] sm:$0xff]
    %105 = vset.pattern.permute.xlu0 0
    %106 = vperm.xlu0 %105, %v103
    %v107 = vpop.permute.xlu0 %106
    %vm109 = vcmask 97280
    %v111 = vsel %vm109, %v102, 0
    %v114 = vsel %vm80, %v101, 0
    %116 = vmatpush.msra.mxu0 0.0
    %117 = vmatpush.msra.mxu0 0.0
    %118 = vmatpush.msra.mxu0 0.0
    %119 = vmatpush.msra.mxu0 0.0
    %120 = vmatpush.msra.mxu0 0.0
    %121 = vmatpush.msra.mxu0 0.0
    %122 = vmatpush.msra.mxu0 0.0
    %123 = vmatpush.msra.mxu0 0.0
    %124 = vmatpush.msra.mxu0 0.0
    %125 = vmatpush.msra.mxu0 0.0
    %126 = vmatpush.msra.mxu0 0.0
    %127 = vmatpush.msra.mxu0 0.0
    %128 = vmatpush.msra.mxu0 0.0
    %129 = vmatpush.msra.mxu0 0.0
    %130 = vmatpush.msra.mxu0 %v114
    %131 = vmatpush.msra.mxu0 %v100
    %132 = vmatmul.f32.gmra.mxu0 %v111
    %v133 = vpop.f32.mrf.mxu0
    %v134 = vadd.f32 %v107, %v133
    %135 = vdwg.mxu0
    %v136 = vmul.f32 %v134, 0.5
    %v137 = vmul.f32 %v134, 0.70710677
    %v138 = vmul.f32 %v137, %v137
    %v139 = vmin.f32 16.0, %v138
    %v140 = vmul.f32 %v139, 2.1237322e-06
    %v141 = vadd.f32 %v140, 0.00028619796
    %v142 = vmul.f32 %v139, %v141
    %v143 = vadd.f32 %v142, 0.0036580483
    %v144 = vmul.f32 %v139, %v143
    %v145 = vadd.f32 %v144, 0.05243302
    %v146 = vmul.f32 %v139, %v145
    %v147 = vadd.f32 %v146, 0.18741608
    %v148 = vmul.f32 %v139, %v147
    %v149 = vadd.f32 %v148, 1.1283791
    %v150 = vmul.f32 %v137, %v149
    %v151 = vmul.f32 %v139, 3.8918573e-05
    %v152 = vadd.f32 %v151, 0.001143296
    %v153 = vmul.f32 %v139, %v152
    %v154 = vadd.f32 %v153, 0.014752088
    %v155 = vmul.f32 %v139, %v154
    %v156 = vadd.f32 %v155, 0.112945676
    %v157 = vmul.f32 %v139, %v156
    %v158 = vadd.f32 %v157, 0.4994258
    %v159 = vmul.f32 %v139, %v158
    %v160 = vadd.f32 %v159, 1.0
    %v161 = vrcp.pop %v160
    %v162 = vmul.f32 %v160, %v161
    %v163 = vsub.f32 1.0, %v162
    %v164 = vmul.f32 %v161, %v163
    %v165 = vadd.f32 %v161, %v164
    %vm166 = vweird.f32 %v160
    %vm167 = vweird.f32 %v161
    %vm168 = vmor %vm166, %vm167
    %v169 = vsel %vm168, %v161, %v165
    %v170 = vand.u32 2147483647, %v160
    %vm171 = vcmp.eq.f32.partialorder %v170, 8.507059e+37
    %v172 = vand.u32 %v160, 2147483648
    %v173 = vor.u32 1.1754944e-38, %v172
    %v174 = vsel %vm171, %v173, %v169
    %v175 = vmul.f32 %v150, %v174
    %v176 = vmin.f32 %v175, 1.0
    %v177 = vmax.f32 %v176, -1.0
    %v178 = vadd.f32 %v177, 1.0
    %v179 = vmul.f32 %v136, %v178
    %v180 = vld [vmem:[#allocation6] sm:$0xff]
    %v181 = vld [vmem:[%s5] sm:$0xff]
    %183 = vset.pattern.permute.xlu0 0
    %184 = vperm.xlu0 %183, %v181
    %v185 = vpop.permute.xlu0 %184
    %vm187 = vcmask 64512
    %v189 = vsel %vm187, %v180, 0
    %191 = vmatpush.msra.mxu0 0.0
    %192 = vmatpush.msra.mxu0 0.0
    %193 = vmatpush.msra.mxu0 0.0
    %194 = vmatpush.msra.mxu0 0.0
    %195 = vmatpush.msra.mxu0 0.0
    %196 = vmatpush.msra.mxu0 0.0
    %197 = vmatpush.msra.mxu0 0.0
    %198 = vmatpush.msra.mxu0 0.0
    %199 = vmatpush.msra.mxu0 0.0
    %200 = vmatpush.msra.mxu0 0.0
    %201 = vmatpush.msra.mxu0 0.0
    %202 = vmatpush.msra.mxu0 0.0
    %203 = vmatpush.msra.mxu0 0.0
    %204 = vmatpush.msra.mxu0 0.0
    %205 = vmatpush.msra.mxu0 0.0
    %206 = vmatpush.msra.mxu0 %v179
    %207 = vmatmul.f32.gmra.mxu0 %v189
    %v208 = vpop.f32.mrf.mxu0
    %v209 = vadd.f32 %v185, %v208
    %210 = vdwg.mxu0
    %v211 = vld [vmem:[%s0] sm:$0xf]
    %v212 = vadd.f32 %v211, %v209
    %vm213 = vcmask 125952
    %214 = vst.msk [vmem:[#allocation8] sm:$0xf] %vm213, %v212
    %v215 = vld [vmem:[%s1] sm:$0xf]
    %v217 = vrot.slane %v209, 4
    %v219 = vadd.f32 %v215, %v217
    %220 = vst.msk [vmem:[#allocation9] sm:$0xf] %vm213, %v219
    %s221 = scalar_lea.vmem %s0, 4
    %v222 = vld [vmem:[%s221] sm:$0xf]
    %223 = vrot.lane.b32.xlu0 %v209, 112
    %v224 = vpop.permute.xlu0 %223
    %v226 = vadd.f32 %v222, %v224
    %s227 = scalar_lea.vmem [#allocation8], 4
    %228 = vst.msk [vmem:[%s227] sm:$0xf] %vm213, %v226
    %s229 = scalar_lea.vmem %s1, 4
    %v230 = vld [vmem:[%s229] sm:$0xf]
    %231 = vrot.lane.b32.xlu0 %v217, 112
    %v232 = vpop.permute.xlu0 %231
    %v234 = vadd.f32 %v230, %v232
    %s235 = scalar_lea.vmem [#allocation9], 4
    %236 = vst.msk [vmem:[%s235] sm:$0xf] %vm213, %v234
    // Predicated region
    $region34: #{tpu_custom_call.1} parent=1 // pred_check
      _
    $region35: #{tpu_custom_call.1} parent=1 // pred_check_branch
      %238 = sbr.rel (0) target = $region37
    $region36: #{tpu_custom_call.1} parent=1 // pred_region
      %240 = vsyncadd [#allocation5], 0
      %s241 = sshll.u32 [#allocation8], 4
      %s242 = int_to_ptr.vmem [resolvable:$true] %s241
      %s243 = sshll.u32 %s6, 4
      %s244 = int_to_ptr.hbm [resolvable:$true] %s243
      %249 = dma.vmem_to_hbm [thread:$0]  %s242, 128, %s244, [#allocation5], 64, 64, 4
    $region37: #{tpu_custom_call.1} parent=1 // pred_fallthru
      _
    // Predicated region
    $region38: #{tpu_custom_call.1} parent=1 // pred_check
      _
    $region39: #{tpu_custom_call.1} parent=1 // pred_check_branch
      %251 = sbr.rel (0) target = $region41
    $region40: #{tpu_custom_call.1} parent=1 // pred_region
      %253 = vsyncadd [#allocation10], 0
      %s254 = sshll.u32 [#allocation9], 4
      %s255 = int_to_ptr.vmem [resolvable:$true] %s254
      %s256 = sshll.u32 %s7, 4
      %s257 = int_to_ptr.hbm [resolvable:$true] %s256
      %262 = dma.vmem_to_hbm [thread:$0]  %s255, 128, %s257, [#allocation10], 64, 64, 4
    $region41: #{tpu_custom_call.1} parent=1 // pred_fallthru
      _
    // Predicated region
    $region42: #{tpu_custom_call.1} parent=1 // pred_check
      _
    $region43: #{tpu_custom_call.1} parent=1 // pred_check_branch
      %264 = sbr.rel (0) target = $region45
    $region44: #{tpu_custom_call.1} parent=1 // pred_region
      %266 = dma.done [#allocation5], 128
    $region45: #{tpu_custom_call.1} parent=1 // pred_fallthru
      _
    // Predicated region
    $region46: #{tpu_custom_call.1} parent=1 // pred_check
      _
    $region47: #{tpu_custom_call.1} parent=1 // pred_check_branch
      %268 = sbr.rel (0) target = $region49
    $region48: #{tpu_custom_call.1} parent=1 // pred_region
      %270 = dma.done [#allocation10], 128
    $region49: #{tpu_custom_call.1} parent=1 // pred_fallthru
      _
    %271 = vsyncpa [#allocation4], 1
    %272 = vsyncpa [#allocation7], 1
    %273 = vsyncpa [#allocation5], 1
    %274 = vsyncpa [#allocation10], 1

</llo_original>
